<compile_context>
chip_gen: v7x
topology: tpu7x:2x2x1
jax: 0.10.0
libtpu: 0.0.40
codegen_flags: <defaults>
</compile_context>

<pallas_src>
import jax
import jax.numpy as jnp
from jax.experimental import pallas as pl
from jax.experimental.pallas import tpu as pltpu


def _round_up(x, m):
    return ((x + m - 1) // m) * m


def _net_forward_kernel(off_ref, x_ref, w1_ref, b1_ref, w2_ref, b2_ref, o_ref):
    # Hidden layer: h = relu(x @ W1 + b1)   (bf16 MXU inputs, f32 accumulation)
    h = jnp.dot(x_ref[...], w1_ref[...], preferred_element_type=jnp.float32)
    h = jnp.maximum(h + b1_ref[...], 0.0)                 # f32 VPU path

    # Output layer: out = h @ W2 + b2
    out = jnp.dot(h.astype(jnp.bfloat16), w2_ref[...],
                  preferred_element_type=jnp.float32)
    out = out + b2_ref[...]

    # Task-offset masking: keep columns in [offset1, offset2), rest -> -1e11.
    col = jax.lax.broadcasted_iota(jnp.int32, out.shape, dimension=1)
    keep = (col >= off_ref[0]) & (col < off_ref[1])
    o_ref[...] = jnp.where(keep, out, jnp.float32(-100000000000.0))


def net_forward(x, w1, b1, w2, b2, t, nc_per_task, n_outputs, *, batch_tile=256):
    """Pallas equivalent of Net.forward(x, t) for an MLP inner net."""
    B, n_in = x.shape
    n_hid = w1.shape[1]
    assert w2.shape == (n_hid, n_outputs)

    # --- lane-dense padded shapes ----------------------------------------
    n_in_p = _round_up(n_in, 128)
    n_hid_p = _round_up(n_hid, 128)
    n_out_p = _round_up(n_outputs, 128)
    # Batch tile: multiple of 16 (bf16 sublane packing), capped at batch_tile.
    tb = min(_round_up(batch_tile, 16), _round_up(B, 16))
    B_p = _round_up(B, tb)

    def pad2(a, rows, cols, dtype):
        a = a.astype(dtype)
        pr, pc = rows - a.shape[0], cols - a.shape[1]
        if pr or pc:
            a = jnp.pad(a, ((0, pr), (0, pc)))
        return a

    # bf16 operands for the MXU (zero padding keeps the math identical);
    # biases stay f32 for the elementwise path.
    x_p = pad2(x, B_p, n_in_p, jnp.bfloat16)
    w1_p = pad2(w1, n_in_p, n_hid_p, jnp.bfloat16)
    w2_p = pad2(w2, n_hid_p, n_out_p, jnp.bfloat16)
    b1_p = pad2(b1.reshape(1, -1), 1, n_hid_p, jnp.float32)
    b2_p = pad2(b2.reshape(1, -1), 1, n_out_p, jnp.float32)

    # Host-side offset computation (t, nc_per_task are Python ints) -> SMEM.
    offsets = jnp.asarray(
        [int(t) * int(nc_per_task), (int(t) + 1) * int(nc_per_task)],
        dtype=jnp.int32)

    grid = (B_p // tb,)

    # --- VMEM budget (double-buffered pipelined tiles + resident weights) ---
    vmem_needed = (
        2 * tb * n_in_p * 2                                 # x tiles (bf16, 2-buf)
        + 2 * tb * n_out_p * 4                              # out tiles (f32, 2-buf)
        + 2 * (n_in_p * n_hid_p + n_hid_p * n_out_p) * 2    # weights (bf16, 2 bufs)
        + 2 * (n_hid_p + n_out_p) * 4                       # biases (f32)
        + tb * (n_hid_p + n_out_p) * 4                      # in-kernel h / out
    )
    vmem_limit = int(min(max(2 * vmem_needed, 8 << 20), 48 << 20))

    cost = pl.CostEstimate(
        flops=2 * B_p * (n_in_p * n_hid_p + n_hid_p * n_out_p),
        transcendentals=0,
        bytes_accessed=(x_p.size * 2 + w1_p.size * 2 + w2_p.size * 2
                        + b1_p.size * 4 + b2_p.size * 4 + B_p * n_out_p * 4),
    )

    grid_spec = pltpu.PrefetchScalarGridSpec(
        num_scalar_prefetch=1,
        grid=grid,
        in_specs=[
            pl.BlockSpec((tb, n_in_p), lambda i, off: (i, 0)),        # x tile
            pl.BlockSpec((n_in_p, n_hid_p), lambda i, off: (0, 0)),   # w1 (resident)
            pl.BlockSpec((1, n_hid_p), lambda i, off: (0, 0)),        # b1 (resident)
            pl.BlockSpec((n_hid_p, n_out_p), lambda i, off: (0, 0)),  # w2 (resident)
            pl.BlockSpec((1, n_out_p), lambda i, off: (0, 0)),        # b2 (resident)
        ],
        out_specs=pl.BlockSpec((tb, n_out_p), lambda i, off: (i, 0)),
    )

    out_p = pl.pallas_call(
        _net_forward_kernel,
        out_shape=jax.ShapeDtypeStruct((B_p, n_out_p), jnp.float32),
        grid_spec=grid_spec,
        compiler_params=pltpu.CompilerParams(
            dimension_semantics=("parallel",),
            vmem_limit_bytes=vmem_limit),
        cost_estimate=cost,
    )(offsets, x_p, w1_p, b1_p, w2_p, b2_p)

    # Slice batch / lane padding back off.
    return out_p[:B, :n_outputs]


def net_forward_ref(x, w1, b1, w2, b2, t, nc_per_task, n_outputs):
    """Pure-JAX f32 reference matching the PyTorch module semantics."""
    h = jnp.maximum(x @ w1 + b1, 0.0)
    out = h @ w2 + b2
    offset1 = t * nc_per_task
    offset2 = (t + 1) * nc_per_task
    col = jnp.arange(n_outputs)[None, :]
    keep = (col >= offset1) & (col < offset2)
    return jnp.where(keep, out, -100000000000.0)


if __name__ == "__main__":
    # Small shapes consistent with the module's __init__:
    #   n_inputs=32, n_hiddens=32, n_outputs=16, n_tasks=4 -> nc_per_task=4
    B, n_inputs, n_hiddens, n_outputs, n_tasks = 8, 32, 32, 16, 4
    nc_per_task = n_outputs // n_tasks
    t = 1  # current task index

    key = jax.random.PRNGKey(0)
    kx, k1, k2, k3, k4 = jax.random.split(key, 5)
    x = jax.random.normal(kx, (B, n_inputs), dtype=jnp.float32)
    w1 = jax.random.normal(k1, (n_inputs, n_hiddens), dtype=jnp.float32) * 0.1
    b1 = jax.random.normal(k2, (1, n_hiddens), dtype=jnp.float32) * 0.1
    w2 = jax.random.normal(k3, (n_hiddens, n_outputs), dtype=jnp.float32) * 0.1
    b2 = jax.random.normal(k4, (1, n_outputs), dtype=jnp.float32) * 0.1

    out = net_forward(x, w1, b1, w2, b2, t, nc_per_task, n_outputs)
    out = jax.block_until_ready(out)

    ref = net_forward_ref(x, w1, b1, w2, b2, t, nc_per_task, n_outputs)
    assert out.shape == (B, n_outputs)
    # bf16 MXU operands (f32 accumulation) => loosened tolerance vs f32 reference.
    assert jnp.allclose(out, ref, atol=5e-2, rtol=5e-2), "mismatch vs reference"

    print("KERNEL_OK")
</pallas_src>

<mosaic_0001>
module attributes {stable_mosaic.version = 11 : i64} {
  func.func @_net_forward_kernel(%arg0: i32, %arg1: memref<2xi32, #tpu.memory_space<smem>>, %arg2: memref<16x128xbf16, #tpu.memory_space<vmem>>, %arg3: memref<128x128xbf16, #tpu.memory_space<vmem>>, %arg4: memref<1x128xf32, #tpu.memory_space<vmem>>, %arg5: memref<128x128xbf16, #tpu.memory_space<vmem>>, %arg6: memref<1x128xf32, #tpu.memory_space<vmem>>, %arg7: memref<16x128xf32, #tpu.memory_space<vmem>>) attributes {dimension_semantics = [#tpu.dimension_semantics<parallel>], iteration_bounds = array<i64: 1>, scalar_prefetch = 1 : i64, scratch_operands = 0 : i64, tpu.core_type = #tpu.core_type<tc>, window_params = [{transform_indices = @transform_0, window_bounds = array<i64: 16, 128>}, {pipeline_mode = #tpu.pipeline_mode<synchronous>, transform_indices = @transform_1, window_bounds = array<i64: 128, 128>}, {pipeline_mode = #tpu.pipeline_mode<synchronous>, transform_indices = @transform_2, window_bounds = array<i64: 1, 128>}, {pipeline_mode = #tpu.pipeline_mode<synchronous>, transform_indices = @transform_3, window_bounds = array<i64: 128, 128>}, {pipeline_mode = #tpu.pipeline_mode<synchronous>, transform_indices = @transform_4, window_bounds = array<i64: 1, 128>}, {transform_indices = @transform_5, window_bounds = array<i64: 16, 128>}]} {
    %c0 = arith.constant 0 : index
    %c0_0 = arith.constant 0 : index
    %0 = vector.load %arg2[%c0, %c0_0] : memref<16x128xbf16, #tpu.memory_space<vmem>>, vector<16x128xbf16>
    %c0_1 = arith.constant 0 : index
    %c0_2 = arith.constant 0 : index
    %1 = vector.load %arg3[%c0_1, %c0_2] : memref<128x128xbf16, #tpu.memory_space<vmem>>, vector<128x128xbf16>
    %cst = arith.constant dense<0.000000e+00> : vector<16x128xf32>
    %2 = tpu.matmul %0, %1, %cst {dimension_numbers = #tpu.dot_dimension_numbers<[1], [0], [0], [1], [0, 0, 1, 1], [], []>} : vector<16x128xbf16>, vector<128x128xbf16>, vector<16x128xf32> -> vector<16x128xf32>
    %c0_3 = arith.constant 0 : index
    %c0_4 = arith.constant 0 : index
    %3 = vector.load %arg4[%c0_3, %c0_4] : memref<1x128xf32, #tpu.memory_space<vmem>>, vector<1x128xf32>
    %4 = vector.broadcast %3 : vector<1x128xf32> to vector<16x128xf32>
    %5 = arith.addf %2, %4 : vector<16x128xf32>
    %cst_5 = arith.constant 0.000000e+00 : f32
    %6 = vector.broadcast %cst_5 : f32 to vector<16x128xf32>
    %7 = arith.maximumf %5, %6 : vector<16x128xf32>
    %8 = arith.truncf %7 : vector<16x128xf32> to vector<16x128xbf16>
    %c0_6 = arith.constant 0 : index
    %c0_7 = arith.constant 0 : index
    %9 = vector.load %arg5[%c0_6, %c0_7] : memref<128x128xbf16, #tpu.memory_space<vmem>>, vector<128x128xbf16>
    %cst_8 = arith.constant dense<0.000000e+00> : vector<16x128xf32>
    %10 = tpu.matmul %8, %9, %cst_8 {dimension_numbers = #tpu.dot_dimension_numbers<[1], [0], [0], [1], [0, 0, 1, 1], [], []>} : vector<16x128xbf16>, vector<128x128xbf16>, vector<16x128xf32> -> vector<16x128xf32>
    %c0_9 = arith.constant 0 : index
    %c0_10 = arith.constant 0 : index
    %11 = vector.load %arg6[%c0_9, %c0_10] : memref<1x128xf32, #tpu.memory_space<vmem>>, vector<1x128xf32>
    %12 = vector.broadcast %11 : vector<1x128xf32> to vector<16x128xf32>
    %13 = arith.addf %10, %12 : vector<16x128xf32>
    %14 = tpu.iota {dimensions = array<i32: 1>} : vector<16x128xi32>
    %c0_11 = arith.constant 0 : index
    %15 = memref.load %arg1[%c0_11] : memref<2xi32, #tpu.memory_space<smem>>
    %16 = vector.broadcast %15 : i32 to vector<16x128xi32>
    %17 = arith.cmpi sge, %14, %16 : vector<16x128xi32>
    %c1 = arith.constant 1 : index
    %18 = memref.load %arg1[%c1] : memref<2xi32, #tpu.memory_space<smem>>
    %19 = vector.broadcast %18 : i32 to vector<16x128xi32>
    %20 = arith.cmpi slt, %14, %19 : vector<16x128xi32>
    %21 = arith.andi %17, %20 : vector<16x128xi1>
    %cst_12 = arith.constant -9.99999979E+10 : f32
    %22 = vector.broadcast %cst_12 : f32 to vector<16x128xf32>
    %23 = arith.select %21, %13, %22 : vector<16x128xi1>, vector<16x128xf32>
    %c0_13 = arith.constant 0 : index
    %c0_14 = arith.constant 0 : index
    %24 = vector.load %arg7[%c0_13, %c0_14] : memref<16x128xf32, #tpu.memory_space<vmem>>, vector<16x128xf32>
    tpu.vector_store %arg7[%c0_13, %c0_14], %23 {strides = array<i32>} : memref<16x128xf32, #tpu.memory_space<vmem>>, vector<16x128xf32>,
    return
  }
  func.func @transform_0(%arg0: i32, %arg1: memref<2xi32, #tpu.memory_space<smem>>) -> (i32, i32) {
    %c0_i32 = arith.constant 0 : i32
    %c0_i32_0 = arith.constant 0 : i32
    return %arg0, %c0_i32 : i32, i32
  }
  func.func @transform_1(%arg0: i32, %arg1: memref<2xi32, #tpu.memory_space<smem>>) -> (i32, i32) {
    %c0_i32 = arith.constant 0 : i32
    %c0_i32_0 = arith.constant 0 : i32
    %c0_i32_1 = arith.constant 0 : i32
    return %c0_i32, %c0_i32_0 : i32, i32
  }
  func.func @transform_2(%arg0: i32, %arg1: memref<2xi32, #tpu.memory_space<smem>>) -> (i32, i32) {
    %c0_i32 = arith.constant 0 : i32
    %c0_i32_0 = arith.constant 0 : i32
    %c0_i32_1 = arith.constant 0 : i32
    return %c0_i32, %c0_i32_0 : i32, i32
  }
  func.func @transform_3(%arg0: i32, %arg1: memref<2xi32, #tpu.memory_space<smem>>) -> (i32, i32) {
    %c0_i32 = arith.constant 0 : i32
    %c0_i32_0 = arith.constant 0 : i32
    %c0_i32_1 = arith.constant 0 : i32
    return %c0_i32, %c0_i32_0 : i32, i32
  }
  func.func @transform_4(%arg0: i32, %arg1: memref<2xi32, #tpu.memory_space<smem>>) -> (i32, i32) {
    %c0_i32 = arith.constant 0 : i32
    %c0_i32_0 = arith.constant 0 : i32
    %c0_i32_1 = arith.constant 0 : i32
    return %c0_i32, %c0_i32_0 : i32, i32
  }
  func.func @transform_5(%arg0: i32, %arg1: memref<2xi32, #tpu.memory_space<smem>>) -> (i32, i32) {
    %c0_i32 = arith.constant 0 : i32
    %c0_i32_0 = arith.constant 0 : i32
    return %arg0, %c0_i32 : i32, i32
  }
}

</mosaic_0001>

<llo_original>
// kernel: tpu_custom_call.1
$region0: #{tpu_custom_call.1}
  #allocation0 [shape = 'u32[]', space=smem, size = 0x4, offset = 0x4, fixed_abs, tag = 'smem constant byte address 0x4 - core index']
  #allocation1 [shape = 'u32[144,128]{1,0:T(1,128)}', space=vmem, size = 0x12000, scoped, tag = 'internal scratch']
  #allocation2 [shape = 's32[1]{0}', space=sflag, size = 0x4, scoped, tag = 'scoped memory for tpu_custom_call.1']
  #allocation3 [shape = 'u8[512]{0}', space=smem, size = 0x200, scoped, tag = 'prefetched SMEM operand 0']
  %s0 = inlined_call_operand.hbm [shape: s32[2], index: 0, kind: input, shape index: {}]
  %s1 = inlined_call_operand.hbm [shape: bf16[16,128], index: 1, kind: input, shape index: {}]
  %s2 = inlined_call_operand.hbm [shape: bf16[128,128], index: 2, kind: input, shape index: {}]
  %s3 = inlined_call_operand.vmem [shape: f32[1,128], index: 3, kind: input, shape index: {}]
  %s4 = inlined_call_operand.hbm [shape: bf16[128,128], index: 4, kind: input, shape index: {}]
  %s5 = inlined_call_operand.vmem [shape: f32[1,128], index: 5, kind: input, shape index: {}]
  %s6 = inlined_call_operand.hbm [shape: f32[16,128], index: 6, kind: output, shape index: {}]
  %s7 = sld [smem:[#allocation0]]
  $region42: #{tpu_custom_call.1} parent=0
    _
  %s9 = ssub.s32 1, %s7
  %s10 = scalar_select 0, %s9, %s7
  %12 = dma.hbm_to_smem %s0, 16, [#allocation3], [#allocation2]
  %13 = dma.done [#allocation2], 16
  %14 = sfence
  $region1: #{tpu_custom_call.1} parent=0
    #allocation4 [shape = 'u8[4096]{0}', space=vmem, size = 0x1000, scoped, tag = 'input window, operand 1, single buffered']
    #allocation5 [shape = 's32[1]{0}', space=sflag, size = 0x4, scoped, tag = 'scoped memory for tpu_custom_call.1']
    #allocation6 [shape = 's32[1]{0}', space=sflag, size = 0x4, scoped, tag = 'scoped memory for tpu_custom_call.1']
    #allocation7 [shape = 'u8[32768]{0}', space=vmem, size = 0x8000, scoped, tag = 'input window, operand 2, single buffered']
    #allocation8 [shape = 's32[1]{0}', space=sflag, size = 0x4, scoped, tag = 'scoped memory for tpu_custom_call.1']
    #allocation9 [shape = 'u8[32768]{0}', space=vmem, size = 0x8000, scoped, tag = 'input window, operand 4, single buffered']
    #allocation10 [shape = 'u8[8192]{0}', space=vmem, size = 0x2000, scoped, tag = 'output window, operand 0, single buffered']
    %15 = vsyncpa [#allocation5], 0
    %16 = vsyncpa [#allocation8], 0
    %17 = vsyncpa [#allocation6], 0
    // Predicated region
    $region2: #{tpu_custom_call.1} parent=1 // pred_check
      _
    $region3: #{tpu_custom_call.1} parent=1 // pred_check_branch
      %19 = sbr.rel (0) target = $region5
    $region4: #{tpu_custom_call.1} parent=1 // pred_region
      %s21 = ssub.s32 128, 128
      %22 = vsyncadd [#allocation5], %s21
      %s23 = sshll.u32 [#allocation4], 4
      %s24 = int_to_ptr.vmem [resolvable:$true] %s23
      %29 = dma.hbm_to_vmem [thread:$0]  %s1, 128, %s24, [#allocation5], 64, 64, 4
    $region5: #{tpu_custom_call.1} parent=1 // pred_fallthru
      _
    // Predicated region
    $region6: #{tpu_custom_call.1} parent=1 // pred_check
      _
    $region7: #{tpu_custom_call.1} parent=1 // pred_check_branch
      %31 = sbr.rel (0) target = $region9
    $region8: #{tpu_custom_call.1} parent=1 // pred_region
      %s33 = ssub.s32 1024, 1024
      %34 = vsyncadd [#allocation8], %s33
      %s35 = sshll.u32 [#allocation7], 4
      %s36 = int_to_ptr.vmem [resolvable:$true] %s35
      %41 = dma.hbm_to_vmem [thread:$0]  %s2, 1024, %s36, [#allocation8], 64, 64, 4
    $region9: #{tpu_custom_call.1} parent=1 // pred_fallthru
      _
    // Predicated region
    $region10: #{tpu_custom_call.1} parent=1 // pred_check
      _
    $region11: #{tpu_custom_call.1} parent=1 // pred_check_branch
      %43 = sbr.rel (0) target = $region13
    $region12: #{tpu_custom_call.1} parent=1 // pred_region
      _
    $region13: #{tpu_custom_call.1} parent=1 // pred_fallthru
      _
    // Predicated region
    $region14: #{tpu_custom_call.1} parent=1 // pred_check
      _
    $region15: #{tpu_custom_call.1} parent=1 // pred_check_branch
      %45 = sbr.rel (0) target = $region17
    $region16: #{tpu_custom_call.1} parent=1 // pred_region
      %s47 = ssub.s32 1024, 1024
      %48 = vsyncadd [#allocation8], %s47
      %s49 = sshll.u32 [#allocation9], 4
      %s50 = int_to_ptr.vmem [resolvable:$true] %s49
      %55 = dma.hbm_to_vmem [thread:$0]  %s4, 1024, %s50, [#allocation8], 64, 64, 4
    $region17: #{tpu_custom_call.1} parent=1 // pred_fallthru
      _
    // Predicated region
    $region18: #{tpu_custom_call.1} parent=1 // pred_check
      _
    $region19: #{tpu_custom_call.1} parent=1 // pred_check_branch
      %57 = sbr.rel (0) target = $region21
    $region20: #{tpu_custom_call.1} parent=1 // pred_region
      _
    $region21: #{tpu_custom_call.1} parent=1 // pred_fallthru
      _
    // Predicated region
    $region22: #{tpu_custom_call.1} parent=1 // pred_check
      _
    $region23: #{tpu_custom_call.1} parent=1 // pred_check_branch
      %59 = sbr.rel (0) target = $region25
    $region24: #{tpu_custom_call.1} parent=1 // pred_region
      %60 = dma.done [#allocation5], 128
    $region25: #{tpu_custom_call.1} parent=1 // pred_fallthru
      _
    // Predicated region
    $region26: #{tpu_custom_call.1} parent=1 // pred_check
      _
    $region27: #{tpu_custom_call.1} parent=1 // pred_check_branch
      %62 = sbr.rel (0) target = $region29
    $region28: #{tpu_custom_call.1} parent=1 // pred_region
      %63 = dma.done [#allocation8], 1024
    $region29: #{tpu_custom_call.1} parent=1 // pred_fallthru
      _
    // Predicated region
    $region30: #{tpu_custom_call.1} parent=1 // pred_check
      _
    $region31: #{tpu_custom_call.1} parent=1 // pred_check_branch
      %65 = sbr.rel (0) target = $region33
    $region32: #{tpu_custom_call.1} parent=1 // pred_region
      %66 = dma.done [#allocation8], 1024
    $region33: #{tpu_custom_call.1} parent=1 // pred_fallthru
      _
    %v68 = vld [vmem:[#allocation4] sm:$0xf]
    %v69 = vld [vmem:[#allocation4 + $0x4] sm:$0xf]
    %v70 = vld [vmem:[#allocation7] sm:$0xf]
    %v71 = vld [vmem:[#allocation7 + $0x4] sm:$0xf]
    %v72 = vld [vmem:[#allocation7 + $0x8] sm:$0xf]
    %v73 = vld [vmem:[#allocation7 + $0xc] sm:$0xf]
    %v74 = vld [vmem:[#allocation7 + $0x10] sm:$0xf]
    %v75 = vld [vmem:[#allocation7 + $0x14] sm:$0xf]
    %v76 = vld [vmem:[#allocation7 + $0x18] sm:$0xf]
    %v77 = vld [vmem:[#allocation7 + $0x1c] sm:$0xf]
    %v78 = vld [vmem:[#allocation7 + $0x20] sm:$0xf]
    %v79 = vld [vmem:[#allocation7 + $0x24] sm:$0xf]
    %v80 = vld [vmem:[#allocation7 + $0x28] sm:$0xf]
    %v81 = vld [vmem:[#allocation7 + $0x2c] sm:$0xf]
    %v82 = vld [vmem:[#allocation7 + $0x30] sm:$0xf]
    %v83 = vld [vmem:[#allocation7 + $0x34] sm:$0xf]
    %v84 = vld [vmem:[#allocation7 + $0x38] sm:$0xf]
    %v85 = vld [vmem:[#allocation7 + $0x3c] sm:$0xf]
    %v86 = vld [vmem:[%s3] sm:$0x1]
    %v88 = vlaneseq
    %v89 = vshrl.u32 %v88, 7
    %v90 = vsub.s32 0, %v89
    %v91 = vrot.slane %v86, %v90
    %v95 = vunpack.c.l.b16 %v68
    %v96 = vunpack.c.l.b16 %v69
    %v97 = vpack.c.b16 %v96, %v95
    %v115 = vunpack.c.l.b16 %v70
    %v116 = vunpack.c.l.b16 %v71
    %v117 = vunpack.c.l.b16 %v72
    %v118 = vunpack.c.l.b16 %v73
    %v119 = vunpack.c.l.b16 %v74
    %v120 = vunpack.c.l.b16 %v75
    %v121 = vunpack.c.l.b16 %v76
    %v122 = vunpack.c.l.b16 %v77
    %v123 = vunpack.c.l.b16 %v78
    %v124 = vunpack.c.l.b16 %v79
    %v125 = vunpack.c.l.b16 %v80
    %v126 = vunpack.c.l.b16 %v81
    %v127 = vunpack.c.l.b16 %v82
    %v128 = vunpack.c.l.b16 %v83
    %v129 = vunpack.c.l.b16 %v84
    %v130 = vunpack.c.l.b16 %v85
    %v131 = vpack.c.b16 %v116, %v115
    %v132 = vpack.c.b16 %v118, %v117
    %v133 = vpack.c.b16 %v120, %v119
    %v134 = vpack.c.b16 %v122, %v121
    %v135 = vpack.c.b16 %v124, %v123
    %v136 = vpack.c.b16 %v126, %v125
    %v137 = vpack.c.b16 %v128, %v127
    %v138 = vpack.c.b16 %v130, %v129
    %147 = vmatprep.subr.bf16.mxu0 0
    %148 = vmatpush1.bf16.msra.mxu0 %v131
    %149 = vmatprep.subr.bf16.mxu0 0
    %150 = vmatpush1.bf16.msra.mxu0 %v132
    %151 = vmatprep.subr.bf16.mxu0 0
    %152 = vmatpush1.bf16.msra.mxu0 %v133
    %153 = vmatprep.subr.bf16.mxu0 0
    %154 = vmatpush1.bf16.msra.mxu0 %v134
    %155 = vmatprep.subr.bf16.mxu0 0
    %156 = vmatpush1.bf16.msra.mxu0 %v135
    %157 = vmatprep.subr.bf16.mxu0 0
    %158 = vmatpush1.bf16.msra.mxu0 %v136
    %159 = vmatprep.subr.bf16.mxu0 0
    %160 = vmatpush1.bf16.msra.mxu0 %v137
    %161 = vmatprep.subr.bf16.mxu0 0
    %162 = vmatpush1.bf16.msra.mxu0 %v138
    %163 = vmatprep.subr.bf16.mxu0 0
    %164 = vmatpush1.bf16.msra.mxu0 0
    %165 = vmatprep.subr.bf16.mxu0 0
    %166 = vmatpush1.bf16.msra.mxu0 0
    %167 = vmatprep.subr.bf16.mxu0 0
    %168 = vmatpush1.bf16.msra.mxu0 0
    %169 = vmatprep.subr.bf16.mxu0 0
    %170 = vmatpush1.bf16.msra.mxu0 0
    %171 = vmatprep.subr.bf16.mxu0 0
    %172 = vmatpush1.bf16.msra.mxu0 0
    %173 = vmatprep.subr.bf16.mxu0 0
    %174 = vmatpush1.bf16.msra.mxu0 0
    %175 = vmatprep.subr.bf16.mxu0 0
    %176 = vmatpush1.bf16.msra.mxu0 0
    %177 = vmatprep.subr.bf16.mxu0 0
    %178 = vmatpush1.bf16.msra.mxu0 0
    %179 = vmatprep.mubr.bf16.mxu0 0
    %180 = vmatmul.mubr.bf16.gmra.mrb[0].mxu0 %v97
    %v181 = vpop.f32.mrb[0].mxu0
    %v182 = vadd.f32 %v91, %v181
    %v183 = vpop.f32.mrb[0].mxu0
    %v184 = vpop.f32.mrb[0].mxu0
    %v185 = vadd.f32 %v91, %v184
    %v186 = vpop.f32.mrb[0].mxu0
    %187 = vdwg.mxu0
    %v188 = vmax.f32 %v182, 0.0
    %v189 = vmax.f32 %v185, 0.0
    %v190 = vpack.c.bf16 %v189, %v188
    %v191 = vld [vmem:[#allocation9] sm:$0xf]
    %v192 = vld [vmem:[#allocation9 + $0x4] sm:$0xf]
    %v193 = vld [vmem:[#allocation9 + $0x8] sm:$0xf]
    %v194 = vld [vmem:[#allocation9 + $0xc] sm:$0xf]
    %v195 = vld [vmem:[#allocation9 + $0x10] sm:$0xf]
    %v196 = vld [vmem:[#allocation9 + $0x14] sm:$0xf]
    %v197 = vld [vmem:[#allocation9 + $0x18] sm:$0xf]
    %v198 = vld [vmem:[#allocation9 + $0x1c] sm:$0xf]
    %v199 = vld [vmem:[#allocation9 + $0x20] sm:$0xf]
    %v200 = vld [vmem:[#allocation9 + $0x24] sm:$0xf]
    %v201 = vld [vmem:[#allocation9 + $0x28] sm:$0xf]
    %v202 = vld [vmem:[#allocation9 + $0x2c] sm:$0xf]
    %v203 = vld [vmem:[#allocation9 + $0x30] sm:$0xf]
    %v204 = vld [vmem:[#allocation9 + $0x34] sm:$0xf]
    %v205 = vld [vmem:[#allocation9 + $0x38] sm:$0xf]
    %v206 = vld [vmem:[#allocation9 + $0x3c] sm:$0xf]
    %v207 = vld [vmem:[%s5] sm:$0x1]
    %v209 = vlaneseq
    %v210 = vshrl.u32 %v209, 7
    %v211 = vsub.s32 0, %v210
    %v212 = vrot.slane %v207, %v211
    %v230 = vunpack.c.l.b16 %v191
    %v231 = vunpack.c.l.b16 %v192
    %v232 = vunpack.c.l.b16 %v193
    %v233 = vunpack.c.l.b16 %v194
    %v234 = vunpack.c.l.b16 %v195
    %v235 = vunpack.c.l.b16 %v196
    %v236 = vunpack.c.l.b16 %v197
    %v237 = vunpack.c.l.b16 %v198
    %v238 = vunpack.c.l.b16 %v199
    %v239 = vunpack.c.l.b16 %v200
    %v240 = vunpack.c.l.b16 %v201
    %v241 = vunpack.c.l.b16 %v202
    %v242 = vunpack.c.l.b16 %v203
    %v243 = vunpack.c.l.b16 %v204
    %v244 = vunpack.c.l.b16 %v205
    %v245 = vunpack.c.l.b16 %v206
    %v246 = vpack.c.b16 %v231, %v230
    %v247 = vpack.c.b16 %v233, %v232
    %v248 = vpack.c.b16 %v235, %v234
    %v249 = vpack.c.b16 %v237, %v236
    %v250 = vpack.c.b16 %v239, %v238
    %v251 = vpack.c.b16 %v241, %v240
    %v252 = vpack.c.b16 %v243, %v242
    %v253 = vpack.c.b16 %v245, %v244
    %262 = vmatprep.subr.bf16.mxu0 0
    %263 = vmatpush1.bf16.msra.mxu0 %v246
    %264 = vmatprep.subr.bf16.mxu0 0
    %265 = vmatpush1.bf16.msra.mxu0 %v247
    %266 = vmatprep.subr.bf16.mxu0 0
    %267 = vmatpush1.bf16.msra.mxu0 %v248
    %268 = vmatprep.subr.bf16.mxu0 0
    %269 = vmatpush1.bf16.msra.mxu0 %v249
    %270 = vmatprep.subr.bf16.mxu0 0
    %271 = vmatpush1.bf16.msra.mxu0 %v250
    %272 = vmatprep.subr.bf16.mxu0 0
    %273 = vmatpush1.bf16.msra.mxu0 %v251
    %274 = vmatprep.subr.bf16.mxu0 0
    %275 = vmatpush1.bf16.msra.mxu0 %v252
    %276 = vmatprep.subr.bf16.mxu0 0
    %277 = vmatpush1.bf16.msra.mxu0 %v253
    %278 = vmatprep.subr.bf16.mxu0 0
    %279 = vmatpush1.bf16.msra.mxu0 0
    %280 = vmatprep.subr.bf16.mxu0 0
    %281 = vmatpush1.bf16.msra.mxu0 0
    %282 = vmatprep.subr.bf16.mxu0 0
    %283 = vmatpush1.bf16.msra.mxu0 0
    %284 = vmatprep.subr.bf16.mxu0 0
    %285 = vmatpush1.bf16.msra.mxu0 0
    %286 = vmatprep.subr.bf16.mxu0 0
    %287 = vmatpush1.bf16.msra.mxu0 0
    %288 = vmatprep.subr.bf16.mxu0 0
    %289 = vmatpush1.bf16.msra.mxu0 0
    %290 = vmatprep.subr.bf16.mxu0 0
    %291 = vmatpush1.bf16.msra.mxu0 0
    %292 = vmatprep.subr.bf16.mxu0 0
    %293 = vmatpush1.bf16.msra.mxu0 0
    %294 = vmatprep.mubr.bf16.mxu0 0
    %295 = vmatmul.mubr.bf16.gmra.mrb[0].mxu0 %v190
    %v296 = vpop.f32.mrb[0].mxu0
    %v297 = vadd.f32 %v212, %v296
    %v298 = vpop.f32.mrb[0].mxu0
    %v299 = vpop.f32.mrb[0].mxu0
    %v300 = vadd.f32 %v212, %v299
    %v301 = vpop.f32.mrb[0].mxu0
    %302 = vdwg.mxu0
    %v303 = vlaneseq
    %v304 = vand.u32 %v303, 127
    %s305 = sld [smem:[#allocation3]]
    %v306 = vstv %s305
    %vm307 = vcmp.ge.s32.totalorder %v304, %v306
    %s308 = sld [smem:[#allocation3 + $0x1]]
    %v309 = vstv %s308
    %vm310 = vcmp.lt.s32.totalorder %v304, %v309
    %vm311 = vmand %vm307, %vm310
    %v312 = vsel %vm311, %v297, -1e+11
    %v313 = vsel %vm311, %v300, -1e+11
    %314 = vst [vmem:[#allocation10] sm:$0xff] %v312
    %315 = vst [vmem:[#allocation10 + $0x8] sm:$0xff] %v313
    // Predicated region
    $region34: #{tpu_custom_call.1} parent=1 // pred_check
      _
    $region35: #{tpu_custom_call.1} parent=1 // pred_check_branch
      %317 = sbr.rel (0) target = $region37
    $region36: #{tpu_custom_call.1} parent=1 // pred_region
      %s319 = ssub.s32 256, 256
      %320 = vsyncadd [#allocation6], %s319
      %s321 = sshll.u32 [#allocation10], 4
      %s322 = int_to_ptr.vmem [resolvable:$true] %s321
      %327 = dma.vmem_to_hbm [thread:$0]  %s322, 256, %s6, [#allocation6], 128, 128, 8
    $region37: #{tpu_custom_call.1} parent=1 // pred_fallthru
      _
    // Predicated region
    $region38: #{tpu_custom_call.1} parent=1 // pred_check
      _
    $region39: #{tpu_custom_call.1} parent=1 // pred_check_branch
      %329 = sbr.rel (0) target = $region41
    $region40: #{tpu_custom_call.1} parent=1 // pred_region
      %330 = dma.done [#allocation6], 256
    $region41: #{tpu_custom_call.1} parent=1 // pred_fallthru
      _
    %331 = vsyncpa [#allocation5], 1
    %332 = vsyncpa [#allocation8], 1
    %333 = vsyncpa [#allocation6], 1

</llo_original>
